<compile_context>
chip_gen: v7x
topology: tpu7x:2x2x1
jax: 0.10.0
libtpu: 0.0.40
codegen_flags: <defaults>
</compile_context>

<pallas_src>
import functools

import jax
import jax.numpy as jnp
from jax.experimental import pallas as pl
from jax.experimental.pallas import tpu as pltpu


def _round_up(x, m):
    return ((x + m - 1) // m) * m


def mini_nn_kernel(x_ref, w1_ref, b1_ref, w2_ref, b2_ref, o_ref):
    # In-kernel f32 -> bf16 cast (VPU slot, hidden under the MXU): avoids a
    # separate wrapper-side convert pass over the activations in HBM.
    x = x_ref[...].astype(w1_ref.dtype)
    # fc1: (tm, Dp) @ (Dp, Dp) on the MXU, f32 accumulation.
    h = jnp.dot(x, w1_ref[...], preferred_element_type=jnp.float32)
    # Bias + ReLU in f32 on the VPU.
    h = jnp.maximum(h + b1_ref[...], 0.0)
    # fc2, bf16 activations back into the MXU, f32 accumulation.
    o = jnp.dot(h.astype(w2_ref.dtype), w2_ref[...],
                preferred_element_type=jnp.float32)
    o_ref[...] = (o + b2_ref[...]).astype(o_ref.dtype)


def prepare_params(w1, b1, w2, b2, compute_dtype=jnp.bfloat16):
    """One-time parameter prep (hoisted out of the per-call path).

    w1, w2 come in PyTorch nn.Linear layout (D_out, D_in); transpose so the
    kernel computes x @ W + b and cast MXU operands to bf16.  Lane padding to
    a multiple of 128 is only applied when D > 128 and not already aligned:
    for small D (e.g. 32) the unpadded variant avoids a 128/D blowup in
    activation/output HBM traffic, and blocks whose last dim equals the full
    array dim are legal.
    """
    D = w1.shape[0]
    if D % 128 == 0 or D < 128:
        Dp = D
    else:
        Dp = _round_up(D, 128)
    pad = Dp - D
    w1_p = jnp.pad(w1.T, ((0, pad), (0, pad))).astype(compute_dtype)
    w2_p = jnp.pad(w2.T, ((0, pad), (0, pad))).astype(compute_dtype)
    b1_p = jnp.pad(b1, (0, pad)).reshape(1, Dp).astype(jnp.float32)
    b2_p = jnp.pad(b2, (0, pad)).reshape(1, Dp).astype(jnp.float32)
    return w1_p, b1_p, w2_p, b2_p


@functools.partial(jax.jit, static_argnames=("block_b", "use_pipeline_modes"))
def mini_nn_forward(x, w1_p, b1_p, w2_p, b2_p, *, block_b=256,
                    use_pipeline_modes=True):
    """x: (B, D) f32; params come from prepare_params (possibly lane-padded)."""
    B, D = x.shape
    Dp = w1_p.shape[0]
    compute_dtype = w1_p.dtype
    out_dtype = x.dtype

    # Batch tile: sublane-aligned, capped at block_b.  For B >= 16 also cap at
    # ~B/2 so there are at least 2 grid steps and ("parallel",) can shard the
    # batch across both TensorCores on v7x.
    tm = min(block_b, _round_up(B, 8))
    if B >= 16:
        tm = min(tm, _round_up(-(-B // 2), 8))
    Bp = _round_up(B, tm)

    # Only pad when actually required (single fused op, stays f32 — the bf16
    # cast happens inside the kernel).
    if Bp != B or Dp != D:
        xp = jnp.pad(x, ((0, Bp - B), (0, Dp - D)))
    else:
        xp = x

    grid = (Bp // tm,)

    itm_w = jnp.dtype(compute_dtype).itemsize
    itm_x = jnp.dtype(x.dtype).itemsize
    itm_o = jnp.dtype(out_dtype).itemsize

    # Pipeline modes: single-buffer the constant-index (resident) operands,
    # deepen x buffering in the memory/latency-bound regime (small Dp).
    resident_mode = pl.Buffered(1) if use_pipeline_modes else None
    x_mode = pl.Buffered(3) if (use_pipeline_modes and Dp <= 512) else None
    x_bufs = 3 if (use_pipeline_modes and Dp <= 512) else 2
    w_bufs = 1 if use_pipeline_modes else 2

    flops = 2 * 2 * Bp * Dp * Dp                       # two (tm,Dp)x(Dp,Dp) matmuls/tile
    bytes_accessed = (Bp * Dp * itm_x                  # x (read f32)
                      + 2 * Dp * Dp * itm_w            # w1, w2 (read once)
                      + 2 * Dp * 4                     # biases
                      + Bp * Dp * itm_o)               # output

    # VMEM working set with the chosen buffer counts.
    vmem_need = (x_bufs * tm * Dp * itm_x              # x blocks
                 + w_bufs * 2 * Dp * Dp * itm_w        # both weight panels
                 + w_bufs * 2 * Dp * 4                 # biases
                 + 2 * tm * Dp * itm_o)                # output blocks

    # Generation-aware VMEM limit: physical capacity minus ~8 MiB headroom
    # (128 MiB on v5e/v6e, 64 MiB on v7x), never below the actual need.
    try:
        vmem_capacity = int(pltpu.get_tpu_info().vmem_capacity_bytes)
    except Exception:
        vmem_capacity = 64 << 20
    usable = max(vmem_capacity - (8 << 20), 16 << 20)
    vmem_limit = int(min(usable, max(32 << 20, int(vmem_need * 1.25))))

    # TODO(synk): when the resident weights approach usable VMEM
    # (w_bufs*2*Dp^2 bf16 bytes; ~Dp>=3.5K on v7x's 64 MiB, ~Dp>=5K on
    # v5e/v6e), switch to a (B-tiles, N-tiles, K-tiles) grid with K last /
    # "arbitrary" and an f32 accumulator scratch instead of fully-resident
    # weight panels.
    out_p = pl.pallas_call(
        mini_nn_kernel,
        out_shape=jax.ShapeDtypeStruct((Bp, Dp), out_dtype),
        grid=grid,
        in_specs=[
            pl.BlockSpec((tm, Dp), lambda i: (i, 0),
                         pipeline_mode=x_mode),            # x: one batch tile/step
            pl.BlockSpec((Dp, Dp), lambda i: (0, 0),
                         pipeline_mode=resident_mode),     # w1^T: resident
            pl.BlockSpec((1, Dp), lambda i: (0, 0),
                         pipeline_mode=resident_mode),     # b1
            pl.BlockSpec((Dp, Dp), lambda i: (0, 0),
                         pipeline_mode=resident_mode),     # w2^T: resident
            pl.BlockSpec((1, Dp), lambda i: (0, 0),
                         pipeline_mode=resident_mode),     # b2
        ],
        out_specs=pl.BlockSpec((tm, Dp), lambda i: (i, 0)),
        compiler_params=pltpu.CompilerParams(
            dimension_semantics=("parallel",),
            vmem_limit_bytes=vmem_limit,
        ),
        cost_estimate=pl.CostEstimate(
            flops=flops, transcendentals=0, bytes_accessed=bytes_accessed),
    )(xp, w1_p, b1_p, w2_p, b2_p)

    if Bp != B or Dp != D:
        out_p = out_p[:B, :D]
    return out_p


def mini_nn_reference(x, w1, b1, w2, b2):
    h = x @ w1.T + b1
    h = jnp.maximum(h, 0.0)
    return h @ w2.T + b2


if __name__ == "__main__":
    B, D = 8, 32  # small shapes consistent with MiniNN(D)

    key = jax.random.PRNGKey(0)
    kx, kw1, kb1, kw2, kb2 = jax.random.split(key, 5)

    x = jax.random.normal(kx, (B, D), dtype=jnp.float32)
    # Deterministic parameter init (mimicking nn.Linear's uniform(-1/sqrt(D), 1/sqrt(D)))
    bound = 1.0 / jnp.sqrt(jnp.float32(D))
    w1 = jax.random.uniform(kw1, (D, D), jnp.float32, -bound, bound)
    b1 = jax.random.uniform(kb1, (D,), jnp.float32, -bound, bound)
    w2 = jax.random.uniform(kw2, (D, D), jnp.float32, -bound, bound)
    b2 = jax.random.uniform(kb2, (D,), jnp.float32, -bound, bound)

    # One-time parameter prep (transpose / optional lane-pad / bf16 cast).
    params = prepare_params(w1, b1, w2, b2)

    try:
        out = jax.block_until_ready(mini_nn_forward(x, *params))
    except Exception:
        # Safety fallback if this JAX build rejects pl.Buffered pipeline modes.
        out = jax.block_until_ready(
            mini_nn_forward(x, *params, use_pipeline_modes=False))

    ref = mini_nn_reference(x, w1, b1, w2, b2)
    assert out.shape == (B, D) and out.dtype == jnp.float32
    # bf16 MXU operands (f32 accumulation) -> loosened tolerance; fine at D=32.
    assert jnp.allclose(out, ref, atol=6e-2, rtol=6e-2), "mismatch vs reference"

    print("KERNEL_OK")
</pallas_src>

<mosaic_0001>
module attributes {stable_mosaic.version = 11 : i64} {
  func.func @mini_nn_kernel(%arg0: i32, %arg1: memref<8x32xf32, #tpu.memory_space<vmem>>, %arg2: memref<32x32xbf16, #tpu.memory_space<vmem>>, %arg3: memref<1x32xf32, #tpu.memory_space<vmem>>, %arg4: memref<32x32xbf16, #tpu.memory_space<vmem>>, %arg5: memref<1x32xf32, #tpu.memory_space<vmem>>, %arg6: memref<8x32xf32, #tpu.memory_space<vmem>>) attributes {dimension_semantics = [#tpu.dimension_semantics<parallel>], iteration_bounds = array<i64: 1>, scalar_prefetch = 0 : i64, scratch_operands = 0 : i64, tpu.core_type = #tpu.core_type<tc>, window_params = [{transform_indices = @transform_0, window_bounds = array<i64: 8, 32>}, {pipeline_mode = #tpu.pipeline_mode<synchronous>, transform_indices = @transform_1, window_bounds = array<i64: 32, 32>}, {pipeline_mode = #tpu.pipeline_mode<synchronous>, transform_indices = @transform_2, window_bounds = array<i64: 1, 32>}, {pipeline_mode = #tpu.pipeline_mode<synchronous>, transform_indices = @transform_3, window_bounds = array<i64: 32, 32>}, {pipeline_mode = #tpu.pipeline_mode<synchronous>, transform_indices = @transform_4, window_bounds = array<i64: 1, 32>}, {transform_indices = @transform_5, window_bounds = array<i64: 8, 32>}]} {
    %c0 = arith.constant 0 : index
    %c0_0 = arith.constant 0 : index
    %0 = vector.load %arg1[%c0, %c0_0] : memref<8x32xf32, #tpu.memory_space<vmem>>, vector<8x32xf32>
    %1 = arith.truncf %0 : vector<8x32xf32> to vector<8x32xbf16>
    %c0_1 = arith.constant 0 : index
    %c0_2 = arith.constant 0 : index
    %2 = vector.load %arg2[%c0_1, %c0_2] : memref<32x32xbf16, #tpu.memory_space<vmem>>, vector<32x32xbf16>
    %cst = arith.constant dense<0.000000e+00> : vector<8x32xf32>
    %3 = tpu.matmul %1, %2, %cst {dimension_numbers = #tpu.dot_dimension_numbers<[1], [0], [0], [1], [0, 0, 1, 1], [], []>} : vector<8x32xbf16>, vector<32x32xbf16>, vector<8x32xf32> -> vector<8x32xf32>
    %c0_3 = arith.constant 0 : index
    %c0_4 = arith.constant 0 : index
    %4 = vector.load %arg3[%c0_3, %c0_4] : memref<1x32xf32, #tpu.memory_space<vmem>>, vector<1x32xf32>
    %5 = vector.broadcast %4 : vector<1x32xf32> to vector<8x32xf32>
    %6 = arith.addf %3, %5 : vector<8x32xf32>
    %cst_5 = arith.constant 0.000000e+00 : f32
    %7 = vector.broadcast %cst_5 : f32 to vector<8x32xf32>
    %8 = arith.maximumf %6, %7 : vector<8x32xf32>
    %9 = arith.truncf %8 : vector<8x32xf32> to vector<8x32xbf16>
    %c0_6 = arith.constant 0 : index
    %c0_7 = arith.constant 0 : index
    %10 = vector.load %arg4[%c0_6, %c0_7] : memref<32x32xbf16, #tpu.memory_space<vmem>>, vector<32x32xbf16>
    %cst_8 = arith.constant dense<0.000000e+00> : vector<8x32xf32>
    %11 = tpu.matmul %9, %10, %cst_8 {dimension_numbers = #tpu.dot_dimension_numbers<[1], [0], [0], [1], [0, 0, 1, 1], [], []>} : vector<8x32xbf16>, vector<32x32xbf16>, vector<8x32xf32> -> vector<8x32xf32>
    %c0_9 = arith.constant 0 : index
    %c0_10 = arith.constant 0 : index
    %12 = vector.load %arg5[%c0_9, %c0_10] : memref<1x32xf32, #tpu.memory_space<vmem>>, vector<1x32xf32>
    %13 = vector.broadcast %12 : vector<1x32xf32> to vector<8x32xf32>
    %14 = arith.addf %11, %13 : vector<8x32xf32>
    %c0_11 = arith.constant 0 : index
    %c0_12 = arith.constant 0 : index
    %15 = vector.load %arg6[%c0_11, %c0_12] : memref<8x32xf32, #tpu.memory_space<vmem>>, vector<8x32xf32>
    tpu.vector_store %arg6[%c0_11, %c0_12], %14 {strides = array<i32>} : memref<8x32xf32, #tpu.memory_space<vmem>>, vector<8x32xf32>,
    return
  }
  func.func @transform_0(%arg0: i32) -> (i32, i32) {
    %c0_i32 = arith.constant 0 : i32
    %c0_i32_0 = arith.constant 0 : i32
    return %arg0, %c0_i32 : i32, i32
  }
  func.func @transform_1(%arg0: i32) -> (i32, i32) {
    %c0_i32 = arith.constant 0 : i32
    %c0_i32_0 = arith.constant 0 : i32
    %c0_i32_1 = arith.constant 0 : i32
    return %c0_i32, %c0_i32_0 : i32, i32
  }
  func.func @transform_2(%arg0: i32) -> (i32, i32) {
    %c0_i32 = arith.constant 0 : i32
    %c0_i32_0 = arith.constant 0 : i32
    %c0_i32_1 = arith.constant 0 : i32
    return %c0_i32, %c0_i32_0 : i32, i32
  }
  func.func @transform_3(%arg0: i32) -> (i32, i32) {
    %c0_i32 = arith.constant 0 : i32
    %c0_i32_0 = arith.constant 0 : i32
    %c0_i32_1 = arith.constant 0 : i32
    return %c0_i32, %c0_i32_0 : i32, i32
  }
  func.func @transform_4(%arg0: i32) -> (i32, i32) {
    %c0_i32 = arith.constant 0 : i32
    %c0_i32_0 = arith.constant 0 : i32
    %c0_i32_1 = arith.constant 0 : i32
    return %c0_i32, %c0_i32_0 : i32, i32
  }
  func.func @transform_5(%arg0: i32) -> (i32, i32) {
    %c0_i32 = arith.constant 0 : i32
    %c0_i32_0 = arith.constant 0 : i32
    return %arg0, %c0_i32 : i32, i32
  }
}

</mosaic_0001>

<llo_original>
// kernel: mini_nn_forward.1
$region0: #{mini_nn_forward.1}
  #allocation0 [shape = 'u32[]', space=smem, size = 0x4, offset = 0x4, fixed_abs, tag = 'smem constant byte address 0x4 - core index']
  #allocation1 [shape = 'u32[144,128]{1,0:T(1,128)}', space=vmem, size = 0x12000, scoped, tag = 'internal scratch']
  %s0 = inlined_call_operand.hbm [shape: f32[8,32], index: 0, kind: input, shape index: {}]
  %s1 = inlined_call_operand.hbm [shape: bf16[32,32], index: 1, kind: input, shape index: {}]
  %s2 = inlined_call_operand.vmem [shape: f32[1,32], index: 2, kind: input, shape index: {}]
  %s3 = inlined_call_operand.hbm [shape: bf16[32,32], index: 3, kind: input, shape index: {}]
  %s4 = inlined_call_operand.vmem [shape: f32[1,32], index: 4, kind: input, shape index: {}]
  %s5 = inlined_call_operand.hbm [shape: f32[8,32], index: 5, kind: output, shape index: {}]
  %s6 = sld [smem:[#allocation0]]
  $region42: #{mini_nn_forward.1} parent=0
    _
  %s8 = ssub.s32 1, %s6
  %s9 = scalar_select 0, %s8, %s6
  $region1: #{mini_nn_forward.1} parent=0
    #allocation2 [shape = 'u8[4096]{0}', space=vmem, size = 0x1000, scoped, tag = 'input window, operand 0, single buffered']
    #allocation3 [shape = 's32[1]{0}', space=sflag, size = 0x4, scoped, tag = 'scoped memory for mini_nn_forward.1']
    #allocation4 [shape = 's32[1]{0}', space=sflag, size = 0x4, scoped, tag = 'scoped memory for mini_nn_forward.1']
    #allocation5 [shape = 'u8[8192]{0}', space=vmem, size = 0x2000, scoped, tag = 'input window, operand 1, single buffered']
    #allocation6 [shape = 's32[1]{0}', space=sflag, size = 0x4, scoped, tag = 'scoped memory for mini_nn_forward.1']
    #allocation7 [shape = 'u8[8192]{0}', space=vmem, size = 0x2000, scoped, tag = 'input window, operand 3, single buffered']
    #allocation8 [shape = 'u8[4096]{0}', space=vmem, size = 0x1000, scoped, tag = 'output window, operand 0, single buffered']
    %10 = vsyncpa [#allocation3], 0
    %11 = vsyncpa [#allocation6], 0
    %12 = vsyncpa [#allocation4], 0
    // Predicated region
    $region2: #{mini_nn_forward.1} parent=1 // pred_check
      _
    $region3: #{mini_nn_forward.1} parent=1 // pred_check_branch
      %14 = sbr.rel (0) target = $region5
    $region4: #{mini_nn_forward.1} parent=1 // pred_region
      %s16 = ssub.s32 128, 128
      %17 = vsyncadd [#allocation3], %s16
      %s19 = sshll.u32 [#allocation2], 4
      %s20 = int_to_ptr.vmem [resolvable:$true] %s19
      %22 = dma.hbm_to_vmem [thread:$0]  %s0, 128, %s20, [#allocation3]
    $region5: #{mini_nn_forward.1} parent=1 // pred_fallthru
      _
    // Predicated region
    $region6: #{mini_nn_forward.1} parent=1 // pred_check
      _
    $region7: #{mini_nn_forward.1} parent=1 // pred_check_branch
      %24 = sbr.rel (0) target = $region9
    $region8: #{mini_nn_forward.1} parent=1 // pred_region
      %s26 = ssub.s32 256, 256
      %27 = vsyncadd [#allocation6], %s26
      %s28 = sshll.u32 [#allocation5], 4
      %s29 = int_to_ptr.vmem [resolvable:$true] %s28
      %34 = dma.hbm_to_vmem [thread:$0]  %s1, 256, %s29, [#allocation6], 64, 64, 4
    $region9: #{mini_nn_forward.1} parent=1 // pred_fallthru
      _
    // Predicated region
    $region10: #{mini_nn_forward.1} parent=1 // pred_check
      _
    $region11: #{mini_nn_forward.1} parent=1 // pred_check_branch
      %36 = sbr.rel (0) target = $region13
    $region12: #{mini_nn_forward.1} parent=1 // pred_region
      _
    $region13: #{mini_nn_forward.1} parent=1 // pred_fallthru
      _
    // Predicated region
    $region14: #{mini_nn_forward.1} parent=1 // pred_check
      _
    $region15: #{mini_nn_forward.1} parent=1 // pred_check_branch
      %38 = sbr.rel (0) target = $region17
    $region16: #{mini_nn_forward.1} parent=1 // pred_region
      %s40 = ssub.s32 256, 256
      %41 = vsyncadd [#allocation6], %s40
      %s42 = sshll.u32 [#allocation7], 4
      %s43 = int_to_ptr.vmem [resolvable:$true] %s42
      %48 = dma.hbm_to_vmem [thread:$0]  %s3, 256, %s43, [#allocation6], 64, 64, 4
    $region17: #{mini_nn_forward.1} parent=1 // pred_fallthru
      _
    // Predicated region
    $region18: #{mini_nn_forward.1} parent=1 // pred_check
      _
    $region19: #{mini_nn_forward.1} parent=1 // pred_check_branch
      %50 = sbr.rel (0) target = $region21
    $region20: #{mini_nn_forward.1} parent=1 // pred_region
      _
    $region21: #{mini_nn_forward.1} parent=1 // pred_fallthru
      _
    // Predicated region
    $region22: #{mini_nn_forward.1} parent=1 // pred_check
      _
    $region23: #{mini_nn_forward.1} parent=1 // pred_check_branch
      %52 = sbr.rel (0) target = $region25
    $region24: #{mini_nn_forward.1} parent=1 // pred_region
      %53 = dma.done [#allocation3], 128
    $region25: #{mini_nn_forward.1} parent=1 // pred_fallthru
      _
    // Predicated region
    $region26: #{mini_nn_forward.1} parent=1 // pred_check
      _
    $region27: #{mini_nn_forward.1} parent=1 // pred_check_branch
      %55 = sbr.rel (0) target = $region29
    $region28: #{mini_nn_forward.1} parent=1 // pred_region
      %56 = dma.done [#allocation6], 256
    $region29: #{mini_nn_forward.1} parent=1 // pred_fallthru
      _
    // Predicated region
    $region30: #{mini_nn_forward.1} parent=1 // pred_check
      _
    $region31: #{mini_nn_forward.1} parent=1 // pred_check_branch
      %58 = sbr.rel (0) target = $region33
    $region32: #{mini_nn_forward.1} parent=1 // pred_region
      %59 = dma.done [#allocation6], 256
    $region33: #{mini_nn_forward.1} parent=1 // pred_fallthru
      _
    %v61 = vld [vmem:[#allocation2] sm:$0xff]
    %v62 = vpack.c.bf16 %v61, %v61
    %v63 = vld [vmem:[#allocation5] sm:$0xf]
    %v64 = vld [vmem:[#allocation5 + $0x4] sm:$0xf]
    %v65 = vld [vmem:[#allocation5 + $0x8] sm:$0xf]
    %v66 = vld [vmem:[#allocation5 + $0xc] sm:$0xf]
    %v67 = vld [vmem:[%s2] sm:$0x1]
    %v69 = vlaneseq
    %v70 = vshrl.u32 %v69, 7
    %v71 = vsub.s32 0, %v70
    %v72 = vrot.slane %v67, %v71
    %v78 = vunpack.c.l.b16 %v63
    %v79 = vunpack.c.l.b16 %v64
    %v80 = vunpack.c.l.b16 %v65
    %v81 = vunpack.c.l.b16 %v66
    %v82 = vpack.c.b16 %v79, %v78
    %v83 = vpack.c.b16 %v81, %v80
    %vm86 = vcmask 261120
    %v88 = vsel %vm86, %v62, 0
    %90 = vmatprep.subr.bf16.mxu0 0
    %91 = vmatpush1.bf16.msra.mxu0 %v82
    %92 = vmatprep.subr.bf16.mxu0 0
    %93 = vmatpush1.bf16.msra.mxu0 %v83
    %94 = vmatprep.subr.bf16.mxu0 0
    %95 = vmatpush1.bf16.msra.mxu0 0
    %96 = vmatprep.subr.bf16.mxu0 0
    %97 = vmatpush1.bf16.msra.mxu0 0
    %98 = vmatprep.subr.bf16.mxu0 0
    %99 = vmatpush1.bf16.msra.mxu0 0
    %100 = vmatprep.subr.bf16.mxu0 0
    %101 = vmatpush1.bf16.msra.mxu0 0
    %102 = vmatprep.subr.bf16.mxu0 0
    %103 = vmatpush1.bf16.msra.mxu0 0
    %104 = vmatprep.subr.bf16.mxu0 0
    %105 = vmatpush1.bf16.msra.mxu0 0
    %106 = vmatprep.subr.bf16.mxu0 0
    %107 = vmatpush1.bf16.msra.mxu0 0
    %108 = vmatprep.subr.bf16.mxu0 0
    %109 = vmatpush1.bf16.msra.mxu0 0
    %110 = vmatprep.subr.bf16.mxu0 0
    %111 = vmatpush1.bf16.msra.mxu0 0
    %112 = vmatprep.subr.bf16.mxu0 0
    %113 = vmatpush1.bf16.msra.mxu0 0
    %114 = vmatprep.subr.bf16.mxu0 0
    %115 = vmatpush1.bf16.msra.mxu0 0
    %116 = vmatprep.subr.bf16.mxu0 0
    %117 = vmatpush1.bf16.msra.mxu0 0
    %118 = vmatprep.subr.bf16.mxu0 0
    %119 = vmatpush1.bf16.msra.mxu0 0
    %120 = vmatprep.subr.bf16.mxu0 0
    %121 = vmatpush1.bf16.msra.mxu0 0
    %122 = vmatprep.mubr.bf16.mxu0 0
    %123 = vmatmul.mubr.bf16.gmra.mrb[0].mxu0 %v88
    %v124 = vpop.f32.mrb[0].mxu0
    %v125 = vadd.f32 %v72, %v124
    %v126 = vpop.f32.mrb[0].mxu0
    %v127 = vpop.f32.mrb[0].mxu0
    %v128 = vpop.f32.mrb[0].mxu0
    %129 = vdwg.mxu0
    %v130 = vmax.f32 %v125, 0.0
    %v131 = vpack.c.bf16 %v130, %v130
    %v132 = vld [vmem:[#allocation7] sm:$0xf]
    %v133 = vld [vmem:[#allocation7 + $0x4] sm:$0xf]
    %v134 = vld [vmem:[#allocation7 + $0x8] sm:$0xf]
    %v135 = vld [vmem:[#allocation7 + $0xc] sm:$0xf]
    %v136 = vld [vmem:[%s4] sm:$0x1]
    %v138 = vlaneseq
    %v139 = vshrl.u32 %v138, 7
    %v140 = vsub.s32 0, %v139
    %v141 = vrot.slane %v136, %v140
    %v147 = vunpack.c.l.b16 %v132
    %v148 = vunpack.c.l.b16 %v133
    %v149 = vunpack.c.l.b16 %v134
    %v150 = vunpack.c.l.b16 %v135
    %v151 = vpack.c.b16 %v148, %v147
    %v152 = vpack.c.b16 %v150, %v149
    %v156 = vsel %vm86, %v131, 0
    %158 = vmatprep.subr.bf16.mxu0 0
    %159 = vmatpush1.bf16.msra.mxu0 %v151
    %160 = vmatprep.subr.bf16.mxu0 0
    %161 = vmatpush1.bf16.msra.mxu0 %v152
    %162 = vmatprep.subr.bf16.mxu0 0
    %163 = vmatpush1.bf16.msra.mxu0 0
    %164 = vmatprep.subr.bf16.mxu0 0
    %165 = vmatpush1.bf16.msra.mxu0 0
    %166 = vmatprep.subr.bf16.mxu0 0
    %167 = vmatpush1.bf16.msra.mxu0 0
    %168 = vmatprep.subr.bf16.mxu0 0
    %169 = vmatpush1.bf16.msra.mxu0 0
    %170 = vmatprep.subr.bf16.mxu0 0
    %171 = vmatpush1.bf16.msra.mxu0 0
    %172 = vmatprep.subr.bf16.mxu0 0
    %173 = vmatpush1.bf16.msra.mxu0 0
    %174 = vmatprep.subr.bf16.mxu0 0
    %175 = vmatpush1.bf16.msra.mxu0 0
    %176 = vmatprep.subr.bf16.mxu0 0
    %177 = vmatpush1.bf16.msra.mxu0 0
    %178 = vmatprep.subr.bf16.mxu0 0
    %179 = vmatpush1.bf16.msra.mxu0 0
    %180 = vmatprep.subr.bf16.mxu0 0
    %181 = vmatpush1.bf16.msra.mxu0 0
    %182 = vmatprep.subr.bf16.mxu0 0
    %183 = vmatpush1.bf16.msra.mxu0 0
    %184 = vmatprep.subr.bf16.mxu0 0
    %185 = vmatpush1.bf16.msra.mxu0 0
    %186 = vmatprep.subr.bf16.mxu0 0
    %187 = vmatpush1.bf16.msra.mxu0 0
    %188 = vmatprep.subr.bf16.mxu0 0
    %189 = vmatpush1.bf16.msra.mxu0 0
    %190 = vmatprep.mubr.bf16.mxu0 0
    %191 = vmatmul.mubr.bf16.gmra.mrb[0].mxu0 %v156
    %v192 = vpop.f32.mrb[0].mxu0
    %v193 = vadd.f32 %v141, %v192
    %v194 = vpop.f32.mrb[0].mxu0
    %v195 = vpop.f32.mrb[0].mxu0
    %v196 = vpop.f32.mrb[0].mxu0
    %197 = vdwg.mxu0
    %198 = vst.msk [vmem:[#allocation8] sm:$0xff] %vm86, %v193
    // Predicated region
    $region34: #{mini_nn_forward.1} parent=1 // pred_check
      _
    $region35: #{mini_nn_forward.1} parent=1 // pred_check_branch
      %200 = sbr.rel (0) target = $region37
    $region36: #{mini_nn_forward.1} parent=1 // pred_region
      %s202 = ssub.s32 128, 128
      %203 = vsyncadd [#allocation4], %s202
      %s205 = sshll.u32 [#allocation8], 4
      %s206 = int_to_ptr.vmem [resolvable:$true] %s205
      %208 = dma.vmem_to_hbm [thread:$0]  %s206, 128, %s5, [#allocation4]
    $region37: #{mini_nn_forward.1} parent=1 // pred_fallthru
      _
    // Predicated region
    $region38: #{mini_nn_forward.1} parent=1 // pred_check
      _
    $region39: #{mini_nn_forward.1} parent=1 // pred_check_branch
      %210 = sbr.rel (0) target = $region41
    $region40: #{mini_nn_forward.1} parent=1 // pred_region
      %211 = dma.done [#allocation4], 128
    $region41: #{mini_nn_forward.1} parent=1 // pred_fallthru
      _
    %212 = vsyncpa [#allocation3], 1
    %213 = vsyncpa [#allocation6], 1
    %214 = vsyncpa [#allocation4], 1

</llo_original>
